<compile_context>
chip_gen: v7x
topology: tpu7x:2x2x1
jax: 0.10.0
libtpu: 0.0.40
codegen_flags: <defaults>
</compile_context>

<pallas_src>
import jax
import jax.numpy as jnp
from jax.experimental import pallas as pl
from jax.experimental.pallas import tpu as pltpu


def _round_up(x, m):
    return ((x + m - 1) // m) * m


# ----------------------------- fused kernel ---------------------------------

def _fused_kernel(x_ref, w1_ref, b1_ref, w2_ref, b2_ref, w3_ref, b3_ref,
                  sel_ref, out_ref):
    cd = w1_ref.dtype                              # compute dtype (bf16)
    half = sel_ref.shape[0]                        # lane-padded 3*O (multiple of 128)
    x = x_ref[...]                                 # (TN, Db+Dt)
    # Layers 1-2: block-diagonal fused matmuls; f32 accumulate/bias/tanh, bf16 carry.
    h = jnp.tanh(jnp.dot(x, w1_ref[...], preferred_element_type=jnp.float32)
                 + b1_ref[...]).astype(cd)         # (TN, 6H)
    h = jnp.tanh(jnp.dot(h, w2_ref[...], preferred_element_type=jnp.float32)
                 + b2_ref[...]).astype(cd)         # (TN, 6H)
    # Layer 3: single merged matmul; branch heads in lanes [0, half), trunk heads in
    # lanes [half, 2*half).  Slices are 128-aligned -> no lane crossing.
    y = jnp.dot(h, w3_ref[...], preferred_element_type=jnp.float32) + b3_ref[...]
    prod = y[:, :half] * y[:, half:]               # (TN, half) f32; pad lanes are 0
    # Per-head sum over the O lanes via 0/1 selector matmul -> lane-dense (TN, 3).
    out_ref[...] = jnp.dot(prod, sel_ref[...], preferred_element_type=jnp.float32)


# ------------------------ host-side weight packing ---------------------------

def pack_params(params, compute_dtype=jnp.bfloat16):
    """Build the fused block-diagonal weights.  Call ONCE and reuse the result;
    this lowers to ~20 scatters + a block_diag and must not run per forward."""
    wb1, wb2, wb3 = params['wb1'], params['wb2'], params['wb3']   # (3,Db,H)(3,H,H)(3,H,O)
    wt1, wt2, wt3 = params['wt1'], params['wt2'], params['wt3']   # (3,Dt,H)(3,H,H)(3,H,O)
    bb1, bb2, bb3 = params['bb1'], params['bb2'], params['bb3']   # (3,1,H)(3,1,H)(3,1,O)
    bt1, bt2, bt3 = params['bt1'], params['bt2'], params['bt3']

    Db, H = wb1.shape[1], wb1.shape[2]
    Dt = wt1.shape[1]
    O = wb3.shape[2]
    f32 = jnp.float32
    half = _round_up(3 * O, 128)

    # At H=32 the block-diagonal zero blocks are cheaper than 6 tiny MXU calls.
    # TODO(synk): if hidden_dim grows to >=128, switch layers 2/3 to per-head
    # 128-aligned slices / separate matmuls instead of block-diag.
    assert H <= 64, "block-diagonal fusion only worthwhile for small hidden_dim"

    # Layer 1: (Db+Dt, 6H); hidden-column order [b_u, b_v, b_p, t_u, t_v, t_p].
    w1 = jnp.zeros((Db + Dt, 6 * H), f32)
    for h in range(3):
        w1 = w1.at[:Db, h * H:(h + 1) * H].set(wb1[h].astype(f32))
        w1 = w1.at[Db:, (3 + h) * H:(4 + h) * H].set(wt1[h].astype(f32))
    b1 = jnp.concatenate([bb1[0], bb1[1], bb1[2],
                          bt1[0], bt1[1], bt1[2]], axis=1).astype(f32)       # (1, 6H)

    # Layer 2: block-diagonal (6H, 6H).
    w2 = jax.scipy.linalg.block_diag(
        wb2[0], wb2[1], wb2[2], wt2[0], wt2[1], wt2[2]).astype(f32)
    b2 = jnp.concatenate([bb2[0], bb2[1], bb2[2],
                          bt2[0], bt2[1], bt2[2]], axis=1).astype(f32)       # (1, 6H)

    # Layer 3 merged: (6H, 2*half).  Branch head h -> lanes [h*O, (h+1)*O);
    # trunk head h -> lanes [half + h*O, half + (h+1)*O).  Pad lanes stay zero.
    w3 = jnp.zeros((6 * H, 2 * half), f32)
    b3 = jnp.zeros((1, 2 * half), f32)
    for h in range(3):
        w3 = w3.at[h * H:(h + 1) * H, h * O:(h + 1) * O].set(wb3[h].astype(f32))
        w3 = w3.at[(3 + h) * H:(4 + h) * H,
                   half + h * O:half + (h + 1) * O].set(wt3[h].astype(f32))
        b3 = b3.at[:, h * O:(h + 1) * O].set(bb3[h].astype(f32))
        b3 = b3.at[:, half + h * O:half + (h + 1) * O].set(bt3[h].astype(f32))

    # Selector (half, 3): column h sums head h's O lanes; pad lanes contribute 0.
    sel = jnp.zeros((half, 3), f32)
    for h in range(3):
        sel = sel.at[h * O:(h + 1) * O, h].set(1.0)

    cd = compute_dtype
    return {'w1': w1.astype(cd), 'b1': b1, 'w2': w2.astype(cd), 'b2': b2,
            'w3': w3.astype(cd), 'b3': b3, 'sel': sel}


# ----------------------------- tiling helpers ---------------------------------

def _num_tensorcores_per_chip():
    """Best effort: v7x has 2 TensorCores/chip, earlier generations have 1."""
    try:
        kind = jax.devices()[0].device_kind.lower()
    except Exception:
        return 1
    if "v7" in kind or "7x" in kind or kind.startswith("tpu7"):
        return 2
    return 1


def _choose_tile(N, tile_n, num_tc):
    TN = _round_up(min(tile_n, _round_up(max(N, 1), 8)), 8)
    Npad = _round_up(N, TN)
    # On multi-TC chips keep >= 2*num_tc grid steps so the "parallel" axis can be
    # sharded across TensorCores; never shrink the tile below 256 rows (per-step
    # overhead dominates below that).  Single-TC chips keep the fewest steps.
    if num_tc > 1:
        min_steps = 2 * num_tc
        while (Npad // TN) < min_steps and TN >= 512:
            TN //= 2
            Npad = _round_up(N, TN)
    return TN, Npad


# ------------------------------ forward wrapper -------------------------------

def urans_pinn_forward(branch_input, trunk_input, packed, *, tile_n=4096):
    """Returns (u, v, p), each (N, 1) float32.

    `packed` is the output of pack_params(params) -- pack once, reuse every call.

    tile_n: rows per grid step.  Each step moves only ~TN*(Din+3) lane-padded
    elements, so large tiles amortise the ~0.35 us/step grid cost.  At TN=4096 the
    double-buffered, 128-lane-padded x/out tiles total ~6 MB, inside every
    generation's scoped-VMEM default; an explicit vmem_limit_bytes is added
    automatically if a larger tile would exceed v5e's 16 MiB default.
    """
    N = branch_input.shape[0]
    cd = packed['w1'].dtype
    x = jnp.concatenate([branch_input, trunk_input], axis=1).astype(cd)      # (N, Db+Dt)
    Din = x.shape[1]
    assert packed['w1'].shape[0] == Din

    num_tc = _num_tensorcores_per_chip()
    TN, Npad = _choose_tile(N, tile_n, num_tc)
    if Npad != N:
        x = jnp.pad(x, ((0, Npad - N), (0, 0)))

    weight_names = ('w1', 'b1', 'w2', 'b2', 'w3', 'b3', 'sel')
    weights = [packed[k] for k in weight_names]

    in_specs = [pl.BlockSpec((TN, Din), lambda i: (i, 0))]
    # Small fused weights, constant index maps: DMA'd once, stay resident in VMEM.
    in_specs += [pl.BlockSpec(w.shape, lambda i: (0, 0)) for w in weights]
    out_spec = pl.BlockSpec((TN, 3), lambda i: (i, 0))

    # Advisory cost estimate so XLA schedules the surrounding concat/pad/slice ops
    # sensibly around a microsecond-scale custom call.
    H6 = packed['w2'].shape[0]          # 6*H
    W3 = packed['w3'].shape[1]          # 2*half
    flops = 2 * Npad * (Din * H6 + H6 * H6 + H6 * W3 + (W3 // 2) * 3)
    weight_bytes = sum(int(w.size) * w.dtype.itemsize for w in weights)
    bytes_accessed = int(Npad * Din * x.dtype.itemsize + Npad * 3 * 4 + weight_bytes)
    cost = pl.CostEstimate(flops=int(flops), transcendentals=int(2 * Npad * H6),
                           bytes_accessed=bytes_accessed)

    # Scoped-VMEM estimate: double-buffered 128-lane-padded x/out tiles + resident
    # weights + f32 intermediates.  Only pass a limit when we would blow past v5e's
    # 16 MiB default.
    itemsize = jnp.dtype(cd).itemsize
    vmem_est = (2 * TN * 128 * itemsize            # x tiles (double-buffered)
                + 2 * TN * 128 * 4                 # out tiles (double-buffered)
                + weight_bytes
                + TN * (H6 + W3) * 4)              # f32 intermediates (h, y)
    cp_kwargs = dict(dimension_semantics=("parallel",))
    if vmem_est > 12 * 1024 * 1024:
        cp_kwargs['vmem_limit_bytes'] = min(2 * int(vmem_est), 48 * 1024 * 1024)

    out = pl.pallas_call(
        _fused_kernel,
        out_shape=jax.ShapeDtypeStruct((Npad, 3), jnp.float32),
        grid_spec=pltpu.PrefetchScalarGridSpec(
            num_scalar_prefetch=0,
            grid=(Npad // TN,),
            in_specs=in_specs,
            out_specs=out_spec,
        ),
        compiler_params=pltpu.CompilerParams(**cp_kwargs),
        cost_estimate=cost,
    )(x, *weights)

    return out[:N, 0:1], out[:N, 1:2], out[:N, 2:3]


# ------------------------------ init & reference ------------------------------

def init_params(key, branch_input_dim, trunk_input_dim, hidden_dim, output_dim):
    """Deterministic init matching torch.nn.Linear default (U(-1/sqrt(fan_in), +))."""
    def linear(k, fan_in, fan_out):
        kw, kb = jax.random.split(k)
        bound = 1.0 / float(fan_in) ** 0.5
        w = jax.random.uniform(kw, (fan_in, fan_out), jnp.float32, -bound, bound)
        b = jax.random.uniform(kb, (1, fan_out), jnp.float32, -bound, bound)
        return w, b

    dims_branch = [(branch_input_dim, hidden_dim),
                   (hidden_dim, hidden_dim),
                   (hidden_dim, output_dim)]
    dims_trunk = [(trunk_input_dim, hidden_dim),
                  (hidden_dim, hidden_dim),
                  (hidden_dim, output_dim)]

    params = {}
    keys = jax.random.split(key, 3)  # one key per head (u, v, p)
    for li, (db_dims, dt_dims) in enumerate(zip(dims_branch, dims_trunk), start=1):
        wbs, bbs, wts, bts = [], [], [], []
        for h in range(3):
            hk = jax.random.fold_in(keys[h], li)
            kb_, kt_ = jax.random.split(hk)
            wb, bb = linear(kb_, *db_dims)
            wt, bt = linear(kt_, *dt_dims)
            wbs.append(wb); bbs.append(bb); wts.append(wt); bts.append(bt)
        params[f'wb{li}'] = jnp.stack(wbs)   # (3, fan_in, fan_out)
        params[f'bb{li}'] = jnp.stack(bbs)   # (3, 1, fan_out)
        params[f'wt{li}'] = jnp.stack(wts)
        params[f'bt{li}'] = jnp.stack(bts)
    return params


def _reference_forward(branch_input, trunk_input, params, compute_dtype=jnp.float32):
    """Pure-JAX reference replicating the PyTorch forward (optionally bf16-matched)."""
    cd = compute_dtype

    def mlp(x, w1, b1, w2, b2, w3, b3):
        h = jnp.tanh(jnp.dot(x.astype(cd), w1.astype(cd),
                             preferred_element_type=jnp.float32) + b1)
        h = jnp.tanh(jnp.dot(h.astype(cd), w2.astype(cd),
                             preferred_element_type=jnp.float32) + b2)
        return jnp.dot(h.astype(cd), w3.astype(cd),
                       preferred_element_type=jnp.float32) + b3

    outs = []
    for h in range(3):
        bo = mlp(branch_input,
                 params['wb1'][h], params['bb1'][h],
                 params['wb2'][h], params['bb2'][h],
                 params['wb3'][h], params['bb3'][h])
        to = mlp(trunk_input,
                 params['wt1'][h], params['bt1'][h],
                 params['wt2'][h], params['bt2'][h],
                 params['wt3'][h], params['bt3'][h])
        outs.append(jnp.sum(bo * to, axis=1, keepdims=True))
    return tuple(outs)


if __name__ == "__main__":
    # Small shapes consistent with the module: branch_input_dim=16,
    # trunk_input_dim=3 (x, y, t), hidden_dim=32, output_dim=32, batch N=8.
    N, Db, Dt, H, O = 8, 16, 3, 32, 32

    key = jax.random.PRNGKey(0)
    k_param, k_branch, k_trunk = jax.random.split(key, 3)

    params = init_params(k_param, Db, Dt, H, O)
    branch_input = jax.random.normal(k_branch, (N, Db), jnp.float32)
    trunk_input = jax.random.normal(k_trunk, (N, Dt), jnp.float32)

    # Pack ONCE (hoisted out of the forward), then run the fused kernel.
    packed = pack_params(params, compute_dtype=jnp.bfloat16)
    fwd = jax.jit(urans_pinn_forward)
    u, v, p = fwd(branch_input, trunk_input, packed)
    jax.block_until_ready((u, v, p))

    assert u.shape == (N, 1) and v.shape == (N, 1) and p.shape == (N, 1)

    # Tight check against a bf16-matched pure-JAX reference (same casts, f32 accum).
    u_b, v_b, p_b = _reference_forward(branch_input, trunk_input, params,
                                       compute_dtype=jnp.bfloat16)
    assert jnp.allclose(u, u_b, atol=2e-3), "u mismatch (bf16-matched reference)"
    assert jnp.allclose(v, v_b, atol=2e-3), "v mismatch (bf16-matched reference)"
    assert jnp.allclose(p, p_b, atol=2e-3), "p mismatch (bf16-matched reference)"

    # Loose sanity check against the exact f32 PyTorch-equivalent reference
    # (difference is only bf16 weight/activation rounding).
    u_r, v_r, p_r = _reference_forward(branch_input, trunk_input, params)
    assert jnp.allclose(u, u_r, atol=1e-1), "u mismatch (f32 reference)"
    assert jnp.allclose(v, v_r, atol=1e-1), "v mismatch (f32 reference)"
    assert jnp.allclose(p, p_r, atol=1e-1), "p mismatch (f32 reference)"

    print("KERNEL_OK")
</pallas_src>

<mosaic_0001>
module attributes {stable_mosaic.version = 11 : i64} {
  func.func @_fused_kernel(%arg0: i32, %arg1: memref<8x19xbf16, #tpu.memory_space<vmem>>, %arg2: memref<19x192xbf16, #tpu.memory_space<vmem>>, %arg3: memref<1x192xf32, #tpu.memory_space<vmem>>, %arg4: memref<192x192xbf16, #tpu.memory_space<vmem>>, %arg5: memref<1x192xf32, #tpu.memory_space<vmem>>, %arg6: memref<192x256xbf16, #tpu.memory_space<vmem>>, %arg7: memref<1x256xf32, #tpu.memory_space<vmem>>, %arg8: memref<128x3xf32, #tpu.memory_space<vmem>>, %arg9: memref<8x3xf32, #tpu.memory_space<vmem>>) attributes {dimension_semantics = [#tpu.dimension_semantics<parallel>], iteration_bounds = array<i64: 1>, scalar_prefetch = 0 : i64, scratch_operands = 0 : i64, tpu.core_type = #tpu.core_type<tc>, window_params = [{transform_indices = @transform_0, window_bounds = array<i64: 8, 19>}, {pipeline_mode = #tpu.pipeline_mode<synchronous>, transform_indices = @transform_1, window_bounds = array<i64: 19, 192>}, {pipeline_mode = #tpu.pipeline_mode<synchronous>, transform_indices = @transform_2, window_bounds = array<i64: 1, 192>}, {pipeline_mode = #tpu.pipeline_mode<synchronous>, transform_indices = @transform_3, window_bounds = array<i64: 192, 192>}, {pipeline_mode = #tpu.pipeline_mode<synchronous>, transform_indices = @transform_4, window_bounds = array<i64: 1, 192>}, {pipeline_mode = #tpu.pipeline_mode<synchronous>, transform_indices = @transform_5, window_bounds = array<i64: 192, 256>}, {pipeline_mode = #tpu.pipeline_mode<synchronous>, transform_indices = @transform_6, window_bounds = array<i64: 1, 256>}, {pipeline_mode = #tpu.pipeline_mode<synchronous>, transform_indices = @transform_7, window_bounds = array<i64: 128, 3>}, {transform_indices = @transform_8, window_bounds = array<i64: 8, 3>}]} {
    %c0 = arith.constant 0 : index
    %c0_0 = arith.constant 0 : index
    %0 = vector.load %arg1[%c0, %c0_0] : memref<8x19xbf16, #tpu.memory_space<vmem>>, vector<8x19xbf16>
    %c0_1 = arith.constant 0 : index
    %c0_2 = arith.constant 0 : index
    %1 = vector.load %arg2[%c0_1, %c0_2] : memref<19x192xbf16, #tpu.memory_space<vmem>>, vector<19x192xbf16>
    %cst = arith.constant dense<0.000000e+00> : vector<8x192xf32>
    %2 = tpu.matmul %0, %1, %cst {dimension_numbers = #tpu.dot_dimension_numbers<[1], [0], [0], [1], [0, 0, 1, 1], [], []>} : vector<8x19xbf16>, vector<19x192xbf16>, vector<8x192xf32> -> vector<8x192xf32>
    %c0_3 = arith.constant 0 : index
    %c0_4 = arith.constant 0 : index
    %3 = vector.load %arg3[%c0_3, %c0_4] : memref<1x192xf32, #tpu.memory_space<vmem>>, vector<1x192xf32>
    %4 = vector.broadcast %3 : vector<1x192xf32> to vector<8x192xf32>
    %5 = arith.addf %2, %4 : vector<8x192xf32>
    %6 = math.tanh %5 : vector<8x192xf32>
    %7 = arith.truncf %6 : vector<8x192xf32> to vector<8x192xbf16>
    %c0_5 = arith.constant 0 : index
    %c0_6 = arith.constant 0 : index
    %8 = vector.load %arg4[%c0_5, %c0_6] : memref<192x192xbf16, #tpu.memory_space<vmem>>, vector<192x192xbf16>
    %cst_7 = arith.constant dense<0.000000e+00> : vector<8x192xf32>
    %9 = tpu.matmul %7, %8, %cst_7 {dimension_numbers = #tpu.dot_dimension_numbers<[1], [0], [0], [1], [0, 0, 1, 1], [], []>} : vector<8x192xbf16>, vector<192x192xbf16>, vector<8x192xf32> -> vector<8x192xf32>
    %c0_8 = arith.constant 0 : index
    %c0_9 = arith.constant 0 : index
    %10 = vector.load %arg5[%c0_8, %c0_9] : memref<1x192xf32, #tpu.memory_space<vmem>>, vector<1x192xf32>
    %11 = vector.broadcast %10 : vector<1x192xf32> to vector<8x192xf32>
    %12 = arith.addf %9, %11 : vector<8x192xf32>
    %13 = math.tanh %12 : vector<8x192xf32>
    %14 = arith.truncf %13 : vector<8x192xf32> to vector<8x192xbf16>
    %c0_10 = arith.constant 0 : index
    %c0_11 = arith.constant 0 : index
    %15 = vector.load %arg6[%c0_10, %c0_11] : memref<192x256xbf16, #tpu.memory_space<vmem>>, vector<192x256xbf16>
    %cst_12 = arith.constant dense<0.000000e+00> : vector<8x256xf32>
    %16 = tpu.matmul %14, %15, %cst_12 {dimension_numbers = #tpu.dot_dimension_numbers<[1], [0], [0], [1], [0, 0, 1, 1], [], []>} : vector<8x192xbf16>, vector<192x256xbf16>, vector<8x256xf32> -> vector<8x256xf32>
    %c0_13 = arith.constant 0 : index
    %c0_14 = arith.constant 0 : index
    %17 = vector.load %arg7[%c0_13, %c0_14] : memref<1x256xf32, #tpu.memory_space<vmem>>, vector<1x256xf32>
    %18 = vector.broadcast %17 : vector<1x256xf32> to vector<8x256xf32>
    %19 = arith.addf %16, %18 : vector<8x256xf32>
    %20 = vector.extract_strided_slice %19 {offsets = [0, 0], sizes = [8, 128], strides = [1, 1]} : vector<8x256xf32> to vector<8x128xf32>
    %21 = vector.extract_strided_slice %19 {offsets = [0, 128], sizes = [8, 128], strides = [1, 1]} : vector<8x256xf32> to vector<8x128xf32>
    %22 = arith.mulf %20, %21 : vector<8x128xf32>
    %c0_15 = arith.constant 0 : index
    %c0_16 = arith.constant 0 : index
    %23 = vector.load %arg8[%c0_15, %c0_16] : memref<128x3xf32, #tpu.memory_space<vmem>>, vector<128x3xf32>
    %cst_17 = arith.constant dense<0.000000e+00> : vector<8x3xf32>
    %24 = tpu.matmul %22, %23, %cst_17 {dimension_numbers = #tpu.dot_dimension_numbers<[1], [0], [0], [1], [0, 0, 1, 1], [], []>} : vector<8x128xf32>, vector<128x3xf32>, vector<8x3xf32> -> vector<8x3xf32>
    %c0_18 = arith.constant 0 : index
    %c0_19 = arith.constant 0 : index
    %25 = vector.load %arg9[%c0_18, %c0_19] : memref<8x3xf32, #tpu.memory_space<vmem>>, vector<8x3xf32>
    tpu.vector_store %arg9[%c0_18, %c0_19], %24 {strides = array<i32>} : memref<8x3xf32, #tpu.memory_space<vmem>>, vector<8x3xf32>,
    return
  }
  func.func @transform_0(%arg0: i32) -> (i32, i32) {
    %c0_i32 = arith.constant 0 : i32
    %c0_i32_0 = arith.constant 0 : i32
    return %arg0, %c0_i32 : i32, i32
  }
  func.func @transform_1(%arg0: i32) -> (i32, i32) {
    %c0_i32 = arith.constant 0 : i32
    %c0_i32_0 = arith.constant 0 : i32
    %c0_i32_1 = arith.constant 0 : i32
    return %c0_i32, %c0_i32_0 : i32, i32
  }
  func.func @transform_2(%arg0: i32) -> (i32, i32) {
    %c0_i32 = arith.constant 0 : i32
    %c0_i32_0 = arith.constant 0 : i32
    %c0_i32_1 = arith.constant 0 : i32
    return %c0_i32, %c0_i32_0 : i32, i32
  }
  func.func @transform_3(%arg0: i32) -> (i32, i32) {
    %c0_i32 = arith.constant 0 : i32
    %c0_i32_0 = arith.constant 0 : i32
    %c0_i32_1 = arith.constant 0 : i32
    return %c0_i32, %c0_i32_0 : i32, i32
  }
  func.func @transform_4(%arg0: i32) -> (i32, i32) {
    %c0_i32 = arith.constant 0 : i32
    %c0_i32_0 = arith.constant 0 : i32
    %c0_i32_1 = arith.constant 0 : i32
    return %c0_i32, %c0_i32_0 : i32, i32
  }
  func.func @transform_5(%arg0: i32) -> (i32, i32) {
    %c0_i32 = arith.constant 0 : i32
    %c0_i32_0 = arith.constant 0 : i32
    %c0_i32_1 = arith.constant 0 : i32
    return %c0_i32, %c0_i32_0 : i32, i32
  }
  func.func @transform_6(%arg0: i32) -> (i32, i32) {
    %c0_i32 = arith.constant 0 : i32
    %c0_i32_0 = arith.constant 0 : i32
    %c0_i32_1 = arith.constant 0 : i32
    return %c0_i32, %c0_i32_0 : i32, i32
  }
  func.func @transform_7(%arg0: i32) -> (i32, i32) {
    %c0_i32 = arith.constant 0 : i32
    %c0_i32_0 = arith.constant 0 : i32
    %c0_i32_1 = arith.constant 0 : i32
    return %c0_i32, %c0_i32_0 : i32, i32
  }
  func.func @transform_8(%arg0: i32) -> (i32, i32) {
    %c0_i32 = arith.constant 0 : i32
    %c0_i32_0 = arith.constant 0 : i32
    return %arg0, %c0_i32 : i32, i32
  }
}

</mosaic_0001>

<llo_original>
// kernel: urans_pinn_forward.1
$region0: #{urans_pinn_forward.1}
  #allocation0 [shape = 'u32[]', space=smem, size = 0x4, offset = 0x4, fixed_abs, tag = 'smem constant byte address 0x4 - core index']
  #allocation1 [shape = 'u32[144,128]{1,0:T(1,128)}', space=vmem, size = 0x12000, scoped, tag = 'internal scratch']
  %s0 = inlined_call_operand.vmem [shape: bf16[8,19], index: 0, kind: input, shape index: {}]
  %s1 = inlined_call_operand.hbm [shape: bf16[19,192], index: 1, kind: input, shape index: {}]
  %s2 = inlined_call_operand.vmem [shape: f32[1,192], index: 2, kind: input, shape index: {}]
  %s3 = inlined_call_operand.vmem [shape: bf16[192,192], index: 3, kind: input, shape index: {}]
  %s4 = inlined_call_operand.hbm [shape: f32[1,192], index: 4, kind: input, shape index: {}]
  %s5 = inlined_call_operand.hbm [shape: bf16[192,256], index: 5, kind: input, shape index: {}]
  %s6 = inlined_call_operand.hbm [shape: f32[1,256], index: 6, kind: input, shape index: {}]
  %s7 = inlined_call_operand.vmem [shape: f32[128,3], index: 7, kind: input, shape index: {}]
  %s8 = inlined_call_operand.vmem [shape: f32[8,3], index: 8, kind: output, shape index: {}]
  %s9 = sld [smem:[#allocation0]]
  $region58: #{urans_pinn_forward.1} parent=0
    _
  %s11 = ssub.s32 1, %s9
  %s12 = scalar_select 0, %s11, %s9
  $region1: #{urans_pinn_forward.1} parent=0
    #allocation2 [shape = 'u8[12288]{0}', space=vmem, size = 0x3000, scoped, tag = 'input window, operand 1, single buffered']
    #allocation3 [shape = 's32[1]{0}', space=sflag, size = 0x4, scoped, tag = 'scoped memory for urans_pinn_forward.1']
    #allocation4 [shape = 'u8[1024]{0}', space=vmem, size = 0x400, scoped, tag = 'input window, operand 4, single buffered']
    #allocation5 [shape = 's32[1]{0}', space=sflag, size = 0x4, scoped, tag = 'scoped memory for urans_pinn_forward.1']
    #allocation6 [shape = 'u8[98304]{0}', space=vmem, size = 0x18000, scoped, tag = 'input window, operand 5, single buffered']
    #allocation7 [shape = 'u8[1024]{0}', space=vmem, size = 0x400, scoped, tag = 'input window, operand 6, single buffered']
    #allocation8 [shape = 's32[1]{0}', space=sflag, size = 0x4, scoped, tag = 'scoped memory for urans_pinn_forward.1']
    %13 = vsyncpa [#allocation3], 0
    %14 = vsyncpa [#allocation5], 0
    %15 = vsyncpa [#allocation8], 0
    // Predicated region
    $region2: #{urans_pinn_forward.1} parent=1 // pred_check
      _
    $region3: #{urans_pinn_forward.1} parent=1 // pred_check_branch
      %17 = sbr.rel (0) target = $region5
    $region4: #{urans_pinn_forward.1} parent=1 // pred_region
      _
    $region5: #{urans_pinn_forward.1} parent=1 // pred_fallthru
      _
    // Predicated region
    $region6: #{urans_pinn_forward.1} parent=1 // pred_check
      _
    $region7: #{urans_pinn_forward.1} parent=1 // pred_check_branch
      %19 = sbr.rel (0) target = $region9
    $region8: #{urans_pinn_forward.1} parent=1 // pred_region
      %s21 = ssub.s32 384, 384
      %22 = vsyncadd [#allocation3], %s21
      %s23 = sshll.u32 [#allocation2], 4
      %s24 = int_to_ptr.vmem [resolvable:$true] %s23
      %29 = dma.hbm_to_vmem [thread:$0]  %s1, 384, %s24, [#allocation3], 128, 128, 8
    $region9: #{urans_pinn_forward.1} parent=1 // pred_fallthru
      _
    // Predicated region
    $region10: #{urans_pinn_forward.1} parent=1 // pred_check
      _
    $region11: #{urans_pinn_forward.1} parent=1 // pred_check_branch
      %31 = sbr.rel (0) target = $region13
    $region12: #{urans_pinn_forward.1} parent=1 // pred_region
      _
    $region13: #{urans_pinn_forward.1} parent=1 // pred_fallthru
      _
    // Predicated region
    $region14: #{urans_pinn_forward.1} parent=1 // pred_check
      _
    $region15: #{urans_pinn_forward.1} parent=1 // pred_check_branch
      %33 = sbr.rel (0) target = $region17
    $region16: #{urans_pinn_forward.1} parent=1 // pred_region
      _
    $region17: #{urans_pinn_forward.1} parent=1 // pred_fallthru
      _
    // Predicated region
    $region18: #{urans_pinn_forward.1} parent=1 // pred_check
      _
    $region19: #{urans_pinn_forward.1} parent=1 // pred_check_branch
      %35 = sbr.rel (0) target = $region21
    $region20: #{urans_pinn_forward.1} parent=1 // pred_region
      %s37 = ssub.s32 32, 32
      %38 = vsyncadd [#allocation5], %s37
      %s40 = sshll.u32 [#allocation4], 4
      %s41 = int_to_ptr.vmem [resolvable:$true] %s40
      %43 = dma.hbm_to_vmem [thread:$0]  %s4, 32, %s41, [#allocation5]
    $region21: #{urans_pinn_forward.1} parent=1 // pred_fallthru
      _
    // Predicated region
    $region22: #{urans_pinn_forward.1} parent=1 // pred_check
      _
    $region23: #{urans_pinn_forward.1} parent=1 // pred_check_branch
      %45 = sbr.rel (0) target = $region25
    $region24: #{urans_pinn_forward.1} parent=1 // pred_region
      %s47 = ssub.s32 3072, 3072
      %48 = vsyncadd [#allocation5], %s47
      %s49 = sshll.u32 [#allocation6], 4
      %s50 = int_to_ptr.vmem [resolvable:$true] %s49
      %55 = dma.hbm_to_vmem [thread:$0]  %s5, 3072, %s50, [#allocation5], 128, 128, 8
    $region25: #{urans_pinn_forward.1} parent=1 // pred_fallthru
      _
    // Predicated region
    $region26: #{urans_pinn_forward.1} parent=1 // pred_check
      _
    $region27: #{urans_pinn_forward.1} parent=1 // pred_check_branch
      %57 = sbr.rel (0) target = $region29
    $region28: #{urans_pinn_forward.1} parent=1 // pred_region
      %s59 = ssub.s32 32, 32
      %60 = vsyncadd [#allocation8], %s59
      %s62 = sshll.u32 [#allocation7], 4
      %s63 = int_to_ptr.vmem [resolvable:$true] %s62
      %65 = dma.hbm_to_vmem [thread:$0]  %s6, 32, %s63, [#allocation8]
    $region29: #{urans_pinn_forward.1} parent=1 // pred_fallthru
      _
    // Predicated region
    $region30: #{urans_pinn_forward.1} parent=1 // pred_check
      _
    $region31: #{urans_pinn_forward.1} parent=1 // pred_check_branch
      %67 = sbr.rel (0) target = $region33
    $region32: #{urans_pinn_forward.1} parent=1 // pred_region
      _
    $region33: #{urans_pinn_forward.1} parent=1 // pred_fallthru
      _
    // Predicated region
    $region34: #{urans_pinn_forward.1} parent=1 // pred_check
      _
    $region35: #{urans_pinn_forward.1} parent=1 // pred_check_branch
      %69 = sbr.rel (0) target = $region37
    $region36: #{urans_pinn_forward.1} parent=1 // pred_region
      %70 = dma.done [#allocation3], 384
    $region37: #{urans_pinn_forward.1} parent=1 // pred_fallthru
      _
    // Predicated region
    $region38: #{urans_pinn_forward.1} parent=1 // pred_check
      _
    $region39: #{urans_pinn_forward.1} parent=1 // pred_check_branch
      %72 = sbr.rel (0) target = $region41
    $region40: #{urans_pinn_forward.1} parent=1 // pred_region
      %73 = dma.done [#allocation5], 32
    $region41: #{urans_pinn_forward.1} parent=1 // pred_fallthru
      _
    // Predicated region
    $region42: #{urans_pinn_forward.1} parent=1 // pred_check
      _
    $region43: #{urans_pinn_forward.1} parent=1 // pred_check_branch
      %75 = sbr.rel (0) target = $region45
    $region44: #{urans_pinn_forward.1} parent=1 // pred_region
      %76 = dma.done [#allocation5], 3072
    $region45: #{urans_pinn_forward.1} parent=1 // pred_fallthru
      _
    // Predicated region
    $region46: #{urans_pinn_forward.1} parent=1 // pred_check
      _
    $region47: #{urans_pinn_forward.1} parent=1 // pred_check_branch
      %78 = sbr.rel (0) target = $region49
    $region48: #{urans_pinn_forward.1} parent=1 // pred_region
      %79 = dma.done [#allocation8], 32
    $region49: #{urans_pinn_forward.1} parent=1 // pred_fallthru
      _
    %v81 = vld [vmem:[%s0] sm:$0xf]
    %v82 = vld [vmem:[#allocation2] sm:$0xff]
    %v83 = vld [vmem:[#allocation2 + $0x8] sm:$0xff]
    %v84 = vld [vmem:[#allocation2 + $0x10] sm:$0x33]
    %v85 = vld [vmem:[%s2] sm:$0x3]
    %v87 = vlaneseq
    %v88 = vshrl.u32 %v87, 7
    %v89 = vsub.s32 0, %v88
    %v90 = vrot.slane %v85, %v89
    %v91 = vlaneseq
    %v92 = vshrl.u32 %v91, 7
    %v93 = vsub.s32 1, %v92
    %v94 = vrot.slane %v85, %v93
    %v100 = vunpack.c.l.b16 %v82
    %v101 = vunpack.c.h.b16 %v82
    %v102 = vunpack.c.l.b16 %v83
    %v103 = vunpack.c.h.b16 %v83
    %v104 = vunpack.c.l.b16 %v84
    %v105 = vunpack.c.h.b16 %v84
    %v106 = vpack.c.b16 %v102, %v100
    %v107 = vpack.c.b16 %v103, %v101
    %v108 = vpack.c.b16 %v104, %v104
    %v109 = vpack.c.b16 %v105, %v105
    %vm112 = vcmask 154624
    %v114 = vsel %vm112, %v81, 0
    %vm116 = vcmask 1040384
    %vm117 = vcmask 1041408
    %v118 = vsel %vm116, 4294967295, 65535
    %v119 = vsel %vm117, %v118, 0
    %v121 = vand.u32 %v108, %v119
    %v124 = vand.u32 %v109, %v119
    %126 = vmatprep.subr.bf16.mxu0 %v107
    %127 = vmatpush1.bf16.msra.mxu0 %v106
    %128 = vmatprep.subr.bf16.mxu0 %v124
    %129 = vmatpush1.bf16.msra.mxu0 %v121
    %130 = vmatprep.subr.bf16.mxu0 0
    %131 = vmatpush1.bf16.msra.mxu0 0
    %132 = vmatprep.subr.bf16.mxu0 0
    %133 = vmatpush1.bf16.msra.mxu0 0
    %134 = vmatprep.subr.bf16.mxu0 0
    %135 = vmatpush1.bf16.msra.mxu0 0
    %136 = vmatprep.subr.bf16.mxu0 0
    %137 = vmatpush1.bf16.msra.mxu0 0
    %138 = vmatprep.subr.bf16.mxu0 0
    %139 = vmatpush1.bf16.msra.mxu0 0
    %140 = vmatprep.subr.bf16.mxu0 0
    %141 = vmatpush1.bf16.msra.mxu0 0
    %142 = vmatprep.subr.bf16.mxu0 0
    %143 = vmatpush1.bf16.msra.mxu0 0
    %144 = vmatprep.subr.bf16.mxu0 0
    %145 = vmatpush1.bf16.msra.mxu0 0
    %146 = vmatprep.subr.bf16.mxu0 0
    %147 = vmatpush1.bf16.msra.mxu0 0
    %148 = vmatprep.subr.bf16.mxu0 0
    %149 = vmatpush1.bf16.msra.mxu0 0
    %150 = vmatprep.subr.bf16.mxu0 0
    %151 = vmatpush1.bf16.msra.mxu0 0
    %152 = vmatprep.subr.bf16.mxu0 0
    %153 = vmatpush1.bf16.msra.mxu0 0
    %154 = vmatprep.subr.bf16.mxu0 0
    %155 = vmatpush1.bf16.msra.mxu0 0
    %156 = vmatprep.subr.bf16.mxu0 0
    %157 = vmatpush1.bf16.msra.mxu0 0
    %158 = vmatprep.mubr.bf16.mxu0 0
    %159 = vmatmul.mubr.bf16.gmra.mrb[0].mxu0 %v114
    %v160 = vpop.f32.mrb[0].mxu0
    %v161 = vadd.f32 %v90, %v160
    %v162 = vpop.f32.mrb[0].mxu0
    %v163 = vadd.f32 %v94, %v162
    %v164 = vpop.f32.mrb[0].mxu0
    %v165 = vpop.f32.mrb[0].mxu0
    %166 = vdwg.mxu0
    %v167 = vtanh.pop %v161
    %v168 = vtanh.pop %v163
    %v169 = vpack.c.bf16 %v167, %v167
    %v170 = vpack.c.bf16 %v168, %v168
    %v171 = vld [vmem:[%s3] sm:$0xff]
    %v172 = vld [vmem:[%s3 + $0x8] sm:$0xff]
    %v173 = vld [vmem:[%s3 + $0x10] sm:$0xff]
    %v174 = vld [vmem:[%s3 + $0x18] sm:$0xff]
    %v175 = vld [vmem:[%s3 + $0x20] sm:$0xff]
    %v176 = vld [vmem:[%s3 + $0x28] sm:$0xff]
    %v177 = vld [vmem:[%s3 + $0x30] sm:$0xff]
    %v178 = vld [vmem:[%s3 + $0x38] sm:$0xff]
    %v179 = vld [vmem:[%s3 + $0x40] sm:$0xff]
    %v180 = vld [vmem:[%s3 + $0x48] sm:$0xff]
    %v181 = vld [vmem:[%s3 + $0x50] sm:$0xff]
    %v182 = vld [vmem:[%s3 + $0x58] sm:$0xff]
    %v183 = vld [vmem:[%s3 + $0x60] sm:$0xff]
    %v184 = vld [vmem:[%s3 + $0x68] sm:$0xff]
    %v185 = vld [vmem:[%s3 + $0x70] sm:$0xff]
    %v186 = vld [vmem:[%s3 + $0x78] sm:$0xff]
    %v187 = vld [vmem:[%s3 + $0x80] sm:$0xff]
    %v188 = vld [vmem:[%s3 + $0x88] sm:$0xff]
    %v189 = vld [vmem:[%s3 + $0x90] sm:$0xff]
    %v190 = vld [vmem:[%s3 + $0x98] sm:$0xff]
    %v191 = vld [vmem:[%s3 + $0xa0] sm:$0xff]
    %v192 = vld [vmem:[%s3 + $0xa8] sm:$0xff]
    %v193 = vld [vmem:[%s3 + $0xb0] sm:$0xff]
    %v194 = vld [vmem:[%s3 + $0xb8] sm:$0xff]
    %v195 = vld [vmem:[#allocation4] sm:$0x3]
    %v197 = vlaneseq
    %v198 = vshrl.u32 %v197, 7
    %v199 = vsub.s32 0, %v198
    %v200 = vrot.slane %v195, %v199
    %v201 = vlaneseq
    %v202 = vshrl.u32 %v201, 7
    %v203 = vsub.s32 1, %v202
    %v204 = vrot.slane %v195, %v203
    %v231 = vunpack.c.l.b16 %v171
    %v232 = vunpack.c.h.b16 %v171
    %v233 = vunpack.c.l.b16 %v172
    %v234 = vunpack.c.h.b16 %v172
    %v235 = vunpack.c.l.b16 %v173
    %v236 = vunpack.c.h.b16 %v173
    %v237 = vunpack.c.l.b16 %v174
    %v238 = vunpack.c.h.b16 %v174
    %v239 = vunpack.c.l.b16 %v175
    %v240 = vunpack.c.h.b16 %v175
    %v241 = vunpack.c.l.b16 %v176
    %v242 = vunpack.c.h.b16 %v176
    %v243 = vunpack.c.l.b16 %v177
    %v244 = vunpack.c.h.b16 %v177
    %v245 = vunpack.c.l.b16 %v178
    %v246 = vunpack.c.h.b16 %v178
    %v247 = vunpack.c.l.b16 %v179
    %v248 = vunpack.c.h.b16 %v179
    %v249 = vunpack.c.l.b16 %v180
    %v250 = vunpack.c.h.b16 %v180
    %v251 = vunpack.c.l.b16 %v181
    %v252 = vunpack.c.h.b16 %v181
    %v253 = vunpack.c.l.b16 %v182
    %v254 = vunpack.c.h.b16 %v182
    %v255 = vunpack.c.l.b16 %v183
    %v256 = vunpack.c.h.b16 %v183
    %v257 = vunpack.c.l.b16 %v184
    %v258 = vunpack.c.h.b16 %v184
    %v259 = vunpack.c.l.b16 %v185
    %v260 = vunpack.c.h.b16 %v185
    %v261 = vunpack.c.l.b16 %v186
    %v262 = vunpack.c.h.b16 %v186
    %v263 = vunpack.c.l.b16 %v187
    %v264 = vunpack.c.h.b16 %v187
    %v265 = vunpack.c.l.b16 %v188
    %v266 = vunpack.c.h.b16 %v188
    %v267 = vunpack.c.l.b16 %v189
    %v268 = vunpack.c.h.b16 %v189
    %v269 = vunpack.c.l.b16 %v190
    %v270 = vunpack.c.h.b16 %v190
    %v271 = vunpack.c.l.b16 %v191
    %v272 = vunpack.c.h.b16 %v191
    %v273 = vunpack.c.l.b16 %v192
    %v274 = vunpack.c.h.b16 %v192
    %v275 = vunpack.c.l.b16 %v193
    %v276 = vunpack.c.h.b16 %v193
    %v277 = vunpack.c.l.b16 %v194
    %v278 = vunpack.c.h.b16 %v194
    %v279 = vpack.c.b16 %v233, %v231
    %v280 = vpack.c.b16 %v234, %v232
    %v281 = vpack.c.b16 %v237, %v235
    %v282 = vpack.c.b16 %v238, %v236
    %v283 = vpack.c.b16 %v241, %v239
    %v284 = vpack.c.b16 %v242, %v240
    %v285 = vpack.c.b16 %v245, %v243
    %v286 = vpack.c.b16 %v246, %v244
    %v287 = vpack.c.b16 %v249, %v247
    %v288 = vpack.c.b16 %v250, %v248
    %v289 = vpack.c.b16 %v253, %v251
    %v290 = vpack.c.b16 %v254, %v252
    %v291 = vpack.c.b16 %v257, %v255
    %v292 = vpack.c.b16 %v258, %v256
    %v293 = vpack.c.b16 %v261, %v259
    %v294 = vpack.c.b16 %v262, %v260
    %v295 = vpack.c.b16 %v265, %v263
    %v296 = vpack.c.b16 %v266, %v264
    %v297 = vpack.c.b16 %v269, %v267
    %v298 = vpack.c.b16 %v270, %v268
    %v299 = vpack.c.b16 %v273, %v271
    %v300 = vpack.c.b16 %v274, %v272
    %v301 = vpack.c.b16 %v277, %v275
    %v302 = vpack.c.b16 %v278, %v276
    %vm327 = vcmask 523264
    %v329 = vsel %vm327, %v170, 0
    %331 = vmatprep.subr.bf16.mxu0 %v280
    %332 = vmatpush1.bf16.msra.mxu0 %v279
    %333 = vmatprep.subr.bf16.mxu0 %v282
    %334 = vmatpush1.bf16.msra.mxu0 %v281
    %335 = vmatprep.subr.bf16.mxu0 %v284
    %336 = vmatpush1.bf16.msra.mxu0 %v283
    %337 = vmatprep.subr.bf16.mxu0 %v286
    %338 = vmatpush1.bf16.msra.mxu0 %v285
    %339 = vmatprep.subr.bf16.mxu0 %v288
    %340 = vmatpush1.bf16.msra.mxu0 %v287
    %341 = vmatprep.subr.bf16.mxu0 %v290
    %342 = vmatpush1.bf16.msra.mxu0 %v289
    %343 = vmatprep.subr.bf16.mxu0 %v292
    %344 = vmatpush1.bf16.msra.mxu0 %v291
    %345 = vmatprep.subr.bf16.mxu0 %v294
    %346 = vmatpush1.bf16.msra.mxu0 %v293
    %347 = vmatprep.subr.bf16.mxu0 %v296
    %348 = vmatpush1.bf16.msra.mxu0 %v295
    %349 = vmatprep.subr.bf16.mxu0 %v298
    %350 = vmatpush1.bf16.msra.mxu0 %v297
    %351 = vmatprep.subr.bf16.mxu0 %v300
    %352 = vmatpush1.bf16.msra.mxu0 %v299
    %353 = vmatprep.subr.bf16.mxu0 %v302
    %354 = vmatpush1.bf16.msra.mxu0 %v301
    %355 = vmatprep.subr.bf16.mxu0 0
    %356 = vmatpush1.bf16.msra.mxu0 0
    %357 = vmatprep.subr.bf16.mxu0 0
    %358 = vmatpush1.bf16.msra.mxu0 0
    %359 = vmatprep.subr.bf16.mxu0 0
    %360 = vmatpush1.bf16.msra.mxu0 0
    %361 = vmatprep.subr.bf16.mxu0 0
    %362 = vmatpush1.bf16.msra.mxu0 0
    %363 = vmatprep.mubr.bf16.mxu0 %v329
    %364 = vmatmul.mubr.bf16.gmra.mrb[0].mxu0 %v169
    %v365 = vpop.f32.mrb[0].mxu0
    %v366 = vadd.f32 %v200, %v365
    %v367 = vpop.f32.mrb[0].mxu0
    %v368 = vadd.f32 %v204, %v367
    %v369 = vpop.f32.mrb[0].mxu0
    %v370 = vpop.f32.mrb[0].mxu0
    %371 = vdwg.mxu0
    %v372 = vtanh.pop %v366
    %v373 = vtanh.pop %v368
    %v374 = vpack.c.bf16 %v372, %v372
    %v375 = vpack.c.bf16 %v373, %v373
    %v376 = vld [vmem:[#allocation6] sm:$0xff]
    %v377 = vld [vmem:[#allocation6 + $0x8] sm:$0xff]
    %v378 = vld [vmem:[#allocation6 + $0x10] sm:$0xff]
    %v379 = vld [vmem:[#allocation6 + $0x18] sm:$0xff]
    %v380 = vld [vmem:[#allocation6 + $0x20] sm:$0xff]
    %v381 = vld [vmem:[#allocation6 + $0x28] sm:$0xff]
    %v382 = vld [vmem:[#allocation6 + $0x30] sm:$0xff]
    %v383 = vld [vmem:[#allocation6 + $0x38] sm:$0xff]
    %v384 = vld [vmem:[#allocation6 + $0x40] sm:$0xff]
    %v385 = vld [vmem:[#allocation6 + $0x48] sm:$0xff]
    %v386 = vld [vmem:[#allocation6 + $0x50] sm:$0xff]
    %v387 = vld [vmem:[#allocation6 + $0x58] sm:$0xff]
    %v388 = vld [vmem:[#allocation6 + $0x60] sm:$0xff]
    %v389 = vld [vmem:[#allocation6 + $0x68] sm:$0xff]
    %v390 = vld [vmem:[#allocation6 + $0x70] sm:$0xff]
    %v391 = vld [vmem:[#allocation6 + $0x78] sm:$0xff]
    %v392 = vld [vmem:[#allocation6 + $0x80] sm:$0xff]
    %v393 = vld [vmem:[#allocation6 + $0x88] sm:$0xff]
    %v394 = vld [vmem:[#allocation6 + $0x90] sm:$0xff]
    %v395 = vld [vmem:[#allocation6 + $0x98] sm:$0xff]
    %v396 = vld [vmem:[#allocation6 + $0xa0] sm:$0xff]
    %v397 = vld [vmem:[#allocation6 + $0xa8] sm:$0xff]
    %v398 = vld [vmem:[#allocation6 + $0xb0] sm:$0xff]
    %v399 = vld [vmem:[#allocation6 + $0xb8] sm:$0xff]
    %v400 = vld [vmem:[#allocation7] sm:$0x3]
    %v402 = vlaneseq
    %v403 = vshrl.u32 %v402, 7
    %v404 = vsub.s32 0, %v403
    %v405 = vrot.slane %v400, %v404
    %v406 = vlaneseq
    %v407 = vshrl.u32 %v406, 7
    %v408 = vsub.s32 1, %v407
    %v409 = vrot.slane %v400, %v408
    %v436 = vunpack.c.l.b16 %v376
    %v437 = vunpack.c.h.b16 %v376
    %v438 = vunpack.c.l.b16 %v377
    %v439 = vunpack.c.h.b16 %v377
    %v440 = vunpack.c.l.b16 %v378
    %v441 = vunpack.c.h.b16 %v378
    %v442 = vunpack.c.l.b16 %v379
    %v443 = vunpack.c.h.b16 %v379
    %v444 = vunpack.c.l.b16 %v380
    %v445 = vunpack.c.h.b16 %v380
    %v446 = vunpack.c.l.b16 %v381
    %v447 = vunpack.c.h.b16 %v381
    %v448 = vunpack.c.l.b16 %v382
    %v449 = vunpack.c.h.b16 %v382
    %v450 = vunpack.c.l.b16 %v383
    %v451 = vunpack.c.h.b16 %v383
    %v452 = vunpack.c.l.b16 %v384
    %v453 = vunpack.c.h.b16 %v384
    %v454 = vunpack.c.l.b16 %v385
    %v455 = vunpack.c.h.b16 %v385
    %v456 = vunpack.c.l.b16 %v386
    %v457 = vunpack.c.h.b16 %v386
    %v458 = vunpack.c.l.b16 %v387
    %v459 = vunpack.c.h.b16 %v387
    %v460 = vunpack.c.l.b16 %v388
    %v461 = vunpack.c.h.b16 %v388
    %v462 = vunpack.c.l.b16 %v389
    %v463 = vunpack.c.h.b16 %v389
    %v464 = vunpack.c.l.b16 %v390
    %v465 = vunpack.c.h.b16 %v390
    %v466 = vunpack.c.l.b16 %v391
    %v467 = vunpack.c.h.b16 %v391
    %v468 = vunpack.c.l.b16 %v392
    %v469 = vunpack.c.h.b16 %v392
    %v470 = vunpack.c.l.b16 %v393
    %v471 = vunpack.c.h.b16 %v393
    %v472 = vunpack.c.l.b16 %v394
    %v473 = vunpack.c.h.b16 %v394
    %v474 = vunpack.c.l.b16 %v395
    %v475 = vunpack.c.h.b16 %v395
    %v476 = vunpack.c.l.b16 %v396
    %v477 = vunpack.c.h.b16 %v396
    %v478 = vunpack.c.l.b16 %v397
    %v479 = vunpack.c.h.b16 %v397
    %v480 = vunpack.c.l.b16 %v398
    %v481 = vunpack.c.h.b16 %v398
    %v482 = vunpack.c.l.b16 %v399
    %v483 = vunpack.c.h.b16 %v399
    %v484 = vpack.c.b16 %v438, %v436
    %v485 = vpack.c.b16 %v439, %v437
    %v486 = vpack.c.b16 %v442, %v440
    %v487 = vpack.c.b16 %v443, %v441
    %v488 = vpack.c.b16 %v446, %v444
    %v489 = vpack.c.b16 %v447, %v445
    %v490 = vpack.c.b16 %v450, %v448
    %v491 = vpack.c.b16 %v451, %v449
    %v492 = vpack.c.b16 %v454, %v452
    %v493 = vpack.c.b16 %v455, %v453
    %v494 = vpack.c.b16 %v458, %v456
    %v495 = vpack.c.b16 %v459, %v457
    %v496 = vpack.c.b16 %v462, %v460
    %v497 = vpack.c.b16 %v463, %v461
    %v498 = vpack.c.b16 %v466, %v464
    %v499 = vpack.c.b16 %v467, %v465
    %v500 = vpack.c.b16 %v470, %v468
    %v501 = vpack.c.b16 %v471, %v469
    %v502 = vpack.c.b16 %v474, %v472
    %v503 = vpack.c.b16 %v475, %v473
    %v504 = vpack.c.b16 %v478, %v476
    %v505 = vpack.c.b16 %v479, %v477
    %v506 = vpack.c.b16 %v482, %v480
    %v507 = vpack.c.b16 %v483, %v481
    %v533 = vsel %vm327, %v375, 0
    %535 = vmatprep.subr.bf16.mxu0 %v485
    %536 = vmatpush1.bf16.msra.mxu0 %v484
    %537 = vmatprep.subr.bf16.mxu0 %v487
    %538 = vmatpush1.bf16.msra.mxu0 %v486
    %539 = vmatprep.subr.bf16.mxu0 %v489
    %540 = vmatpush1.bf16.msra.mxu0 %v488
    %541 = vmatprep.subr.bf16.mxu0 %v491
    %542 = vmatpush1.bf16.msra.mxu0 %v490
    %543 = vmatprep.subr.bf16.mxu0 %v493
    %544 = vmatpush1.bf16.msra.mxu0 %v492
    %545 = vmatprep.subr.bf16.mxu0 %v495
    %546 = vmatpush1.bf16.msra.mxu0 %v494
    %547 = vmatprep.subr.bf16.mxu0 %v497
    %548 = vmatpush1.bf16.msra.mxu0 %v496
    %549 = vmatprep.subr.bf16.mxu0 %v499
    %550 = vmatpush1.bf16.msra.mxu0 %v498
    %551 = vmatprep.subr.bf16.mxu0 %v501
    %552 = vmatpush1.bf16.msra.mxu0 %v500
    %553 = vmatprep.subr.bf16.mxu0 %v503
    %554 = vmatpush1.bf16.msra.mxu0 %v502
    %555 = vmatprep.subr.bf16.mxu0 %v505
    %556 = vmatpush1.bf16.msra.mxu0 %v504
    %557 = vmatprep.subr.bf16.mxu0 %v507
    %558 = vmatpush1.bf16.msra.mxu0 %v506
    %559 = vmatprep.subr.bf16.mxu0 0
    %560 = vmatpush1.bf16.msra.mxu0 0
    %561 = vmatprep.subr.bf16.mxu0 0
    %562 = vmatpush1.bf16.msra.mxu0 0
    %563 = vmatprep.subr.bf16.mxu0 0
    %564 = vmatpush1.bf16.msra.mxu0 0
    %565 = vmatprep.subr.bf16.mxu0 0
    %566 = vmatpush1.bf16.msra.mxu0 0
    %567 = vmatprep.mubr.bf16.mxu0 %v533
    %568 = vmatmul.mubr.bf16.gmra.mrb[0].mxu0 %v374
    %v569 = vpop.f32.mrb[0].mxu0
    %v570 = vadd.f32 %v405, %v569
    %v571 = vpop.f32.mrb[0].mxu0
    %v572 = vadd.f32 %v409, %v571
    %v573 = vpop.f32.mrb[0].mxu0
    %v574 = vpop.f32.mrb[0].mxu0
    %575 = vdwg.mxu0
    %v576 = vmul.f32 %v570, %v572
    %v577 = vld [vmem:[%s7] sm:$0xff]
    %v578 = vld [vmem:[%s7 + $0x8] sm:$0xff]
    %v579 = vld [vmem:[%s7 + $0x10] sm:$0xff]
    %v580 = vld [vmem:[%s7 + $0x18] sm:$0xff]
    %v581 = vld [vmem:[%s7 + $0x20] sm:$0xff]
    %v582 = vld [vmem:[%s7 + $0x28] sm:$0xff]
    %v583 = vld [vmem:[%s7 + $0x30] sm:$0xff]
    %v584 = vld [vmem:[%s7 + $0x38] sm:$0xff]
    %v585 = vld [vmem:[%s7 + $0x40] sm:$0xff]
    %v586 = vld [vmem:[%s7 + $0x48] sm:$0xff]
    %v587 = vld [vmem:[%s7 + $0x50] sm:$0xff]
    %v588 = vld [vmem:[%s7 + $0x58] sm:$0xff]
    %v589 = vld [vmem:[%s7 + $0x60] sm:$0xff]
    %v590 = vld [vmem:[%s7 + $0x68] sm:$0xff]
    %v591 = vld [vmem:[%s7 + $0x70] sm:$0xff]
    %v592 = vld [vmem:[%s7 + $0x78] sm:$0xff]
    %593 = vmatprep.subr.mxu0 0.0
    %594 = vmatpush1.msra.mxu0 %v577
    %595 = vmatprep.subr.mxu0 0.0
    %596 = vmatpush1.msra.mxu0 %v578
    %597 = vmatprep.subr.mxu0 0.0
    %598 = vmatpush1.msra.mxu0 %v579
    %599 = vmatprep.subr.mxu0 0.0
    %600 = vmatpush1.msra.mxu0 %v580
    %601 = vmatprep.subr.mxu0 0.0
    %602 = vmatpush1.msra.mxu0 %v581
    %603 = vmatprep.subr.mxu0 0.0
    %604 = vmatpush1.msra.mxu0 %v582
    %605 = vmatprep.subr.mxu0 0.0
    %606 = vmatpush1.msra.mxu0 %v583
    %607 = vmatprep.subr.mxu0 0.0
    %608 = vmatpush1.msra.mxu0 %v584
    %609 = vmatprep.subr.mxu0 0.0
    %610 = vmatpush1.msra.mxu0 %v585
    %611 = vmatprep.subr.mxu0 0.0
    %612 = vmatpush1.msra.mxu0 %v586
    %613 = vmatprep.subr.mxu0 0.0
    %614 = vmatpush1.msra.mxu0 %v587
    %615 = vmatprep.subr.mxu0 0.0
    %616 = vmatpush1.msra.mxu0 %v588
    %617 = vmatprep.subr.mxu0 0.0
    %618 = vmatpush1.msra.mxu0 %v589
    %619 = vmatprep.subr.mxu0 0.0
    %620 = vmatpush1.msra.mxu0 %v590
    %621 = vmatprep.subr.mxu0 0.0
    %622 = vmatpush1.msra.mxu0 %v591
    %623 = vmatprep.subr.mxu0 0.0
    %624 = vmatpush1.msra.mxu0 %v592
    %625 = vmatprep.subr.mxu0 0.0
    %626 = vmatpush1.msra.mxu0 0.0
    %627 = vmatprep.subr.mxu0 0.0
    %628 = vmatpush1.msra.mxu0 0.0
    %629 = vmatprep.subr.mxu0 0.0
    %630 = vmatpush1.msra.mxu0 0.0
    %631 = vmatprep.subr.mxu0 0.0
    %632 = vmatpush1.msra.mxu0 0.0
    %633 = vmatprep.subr.mxu0 0.0
    %634 = vmatpush1.msra.mxu0 0.0
    %635 = vmatprep.subr.mxu0 0.0
    %636 = vmatpush1.msra.mxu0 0.0
    %637 = vmatprep.subr.mxu0 0.0
    %638 = vmatpush1.msra.mxu0 0.0
    %639 = vmatprep.subr.mxu0 0.0
    %640 = vmatpush1.msra.mxu0 0.0
    %641 = vmatprep.subr.mxu0 0.0
    %642 = vmatpush1.msra.mxu0 0.0
    %643 = vmatprep.subr.mxu0 0.0
    %644 = vmatpush1.msra.mxu0 0.0
    %645 = vmatprep.subr.mxu0 0.0
    %646 = vmatpush1.msra.mxu0 0.0
    %647 = vmatprep.subr.mxu0 0.0
    %648 = vmatpush1.msra.mxu0 0.0
    %649 = vmatprep.subr.mxu0 0.0
    %650 = vmatpush1.msra.mxu0 0.0
    %651 = vmatprep.subr.mxu0 0.0
    %652 = vmatpush1.msra.mxu0 0.0
    %653 = vmatprep.subr.mxu0 0.0
    %654 = vmatpush1.msra.mxu0 0.0
    %655 = vmatprep.subr.mxu0 0.0
    %656 = vmatpush1.msra.mxu0 0.0
    %657 = vmatprep.mubr.f32.mxu0 0.0
    %658 = vmatmul.mubr.f32.gmra.mrb[0].mxu0 %v576
    %v659 = vpop.f32.mrb[0].mxu0
    %v660 = vadd.f32 0.0, %v659
    %v661 = vpop.f32.mrb[0].mxu0
    %662 = vdwg.mxu0
    %vm663 = vcmask 23552
    %664 = vst.msk [vmem:[%s8] sm:$0xff] %vm663, %v660
    // Predicated region
    $region50: #{urans_pinn_forward.1} parent=1 // pred_check
      _
    $region51: #{urans_pinn_forward.1} parent=1 // pred_check_branch
      %666 = sbr.rel (0) target = $region53
    $region52: #{urans_pinn_forward.1} parent=1 // pred_region
      _
    $region53: #{urans_pinn_forward.1} parent=1 // pred_fallthru
      _
    // Predicated region
    $region54: #{urans_pinn_forward.1} parent=1 // pred_check
      _
    $region55: #{urans_pinn_forward.1} parent=1 // pred_check_branch
      %668 = sbr.rel (0) target = $region57
    $region56: #{urans_pinn_forward.1} parent=1 // pred_region
      _
    $region57: #{urans_pinn_forward.1} parent=1 // pred_fallthru
      _
    %669 = vsyncpa [#allocation3], 1
    %670 = vsyncpa [#allocation5], 1
    %671 = vsyncpa [#allocation8], 1

</llo_original>
